<compile_context>
chip_gen: v7x
topology: tpu7x:2x2x1
jax: 0.10.0
libtpu: 0.0.40
codegen_flags: <defaults>
</compile_context>

<pallas_src>
import jax
import jax.numpy as jnp
from jax.experimental import pallas as pl
from jax.experimental.pallas import tpu as pltpu

# Module constants (from vit_cleaned.py)
EMBED_DIM = 768
NUM_CHANNELS = 1
PATCH_SIZE = 16


def _patch_embed_kernel(x_ref, w_ref, b_ref, o_ref):
    # x_ref: (tm, K) patch tile          (pipelined over the M grid axis)
    # w_ref: (K, E)  full weight          (constant index_map -> VMEM resident)
    # b_ref: (1, E)  bias, f32
    # o_ref: (tm, E) lane-dense output tile
    acc = jnp.dot(x_ref[...], w_ref[...], preferred_element_type=jnp.float32)
    o_ref[...] = (acc + b_ref[...]).astype(o_ref.dtype)


def _round_up(x, m):
    return (x + m - 1) // m * m


def _cdiv(a, b):
    return (a + b - 1) // b


def _choose_tm(M, tm_max):
    """Pick the M-tile size.

    Multiple of 8 (f32 sublanes; also fine for bf16 packing) and, for large
    problems, a multiple of 256 (full MXU passes).  Big enough to amortize the
    ~0.35 us/grid-step overhead, small enough that the grid has >= 4 steps so
    the "parallel" M axis keeps both v7x TensorCores busy.
    """
    if M <= 512:
        return _round_up(M, 8)              # tiny problem: a single step is fine
    tm = _round_up(_cdiv(M, 4), 256)        # aim for >= 4 grid steps
    return int(max(256, min(tm_max, tm)))


def patch_embedding(x, conv_weight, conv_bias, *, tm=None,
                    compute_dtype=None, out_dtype=None):
    """x: (B, C, H, W); conv_weight: (E, C, P, P); conv_bias: (E,) -> (B, N, E)."""
    B, C, H, W = x.shape
    E = conv_weight.shape[0]
    P = PATCH_SIZE
    assert C == conv_weight.shape[1] and H % P == 0 and W % P == 0
    Hn, Wn = H // P, W // P
    N = Hn * Wn
    K = C * P * P
    M = B * N

    if compute_dtype is None:
        compute_dtype = x.dtype
    if out_dtype is None:
        out_dtype = x.dtype
    c_bytes = jnp.dtype(compute_dtype).itemsize
    o_bytes = jnp.dtype(out_dtype).itemsize

    # Cast *before* the patchify so that, if the transpose does materialize, the
    # intermediate is already at compute width (half-size for bf16).
    xc = x.astype(compute_dtype)
    # Patchify to (M, K) matching the conv's (c, kh, kw) reduction order.
    # allow_input_fusion below lets XLA fuse this into the kernel's input DMA.
    patches = xc.reshape(B, C, Hn, P, Wn, P).transpose(0, 2, 4, 1, 3, 5).reshape(M, K)

    # Conv weight (E, C, P, P) -> (K, E); bias -> (1, E) in f32.
    # In a training/inference loop, hoist this (K, E) weight out of the step fn.
    w2d = conv_weight.reshape(E, K).T.astype(compute_dtype)
    b2d = conv_bias.reshape(1, E).astype(jnp.float32)

    # --- M tiling (no padding; Pallas masks the ragged last tile).
    if tm is None:
        tm_max = 2048 if max(c_bytes, o_bytes) >= 4 else 4096
        tm = _choose_tm(M, tm_max)
    else:
        tm = min(_round_up(int(tm), 8), _round_up(M, 8))

    grid = (_cdiv(M, tm),)

    # Double-buffered per-step working set + headroom; capped at 48 MiB so it
    # stays safe on v7x's 64 MiB physical VMEM (v5e/v6e have 128 MiB).
    vmem_bytes = (2 * tm * K * c_bytes + 2 * tm * E * o_bytes
                  + 2 * K * E * c_bytes + 2 * E * 4 + (2 << 20))
    vmem_limit = int(min(max(32 << 20, vmem_bytes), 48 << 20))

    cost = pl.CostEstimate(
        flops=2 * M * K * E,
        transcendentals=0,
        bytes_accessed=c_bytes * (M * K + K * E) + 4 * E + o_bytes * M * E,
    )

    out = pl.pallas_call(
        _patch_embed_kernel,
        out_shape=jax.ShapeDtypeStruct((M, E), out_dtype),
        grid_spec=pltpu.PrefetchScalarGridSpec(
            num_scalar_prefetch=0,
            grid=grid,
            in_specs=[
                pl.BlockSpec((tm, K), lambda i: (i, 0)),  # patch tile (pipelined)
                pl.BlockSpec((K, E), lambda i: (0, 0)),   # weight, DMA'd once
                pl.BlockSpec((1, E), lambda i: (0, 0)),   # bias, DMA'd once
            ],
            out_specs=pl.BlockSpec((tm, E), lambda i: (i, 0)),
        ),
        compiler_params=pltpu.CompilerParams(
            dimension_semantics=("parallel",),         # M shards across TCs (v7x)
            allow_input_fusion=[True, False, False],   # fuse patchify transpose
            vmem_limit_bytes=vmem_limit,
        ),
        cost_estimate=cost,
    )(patches, w2d, b2d)

    # (M, E) -> (B, N, E)  == Conv2d -> Flatten(2,3) -> permute(0,2,1)
    return out.reshape(B, N, E)


def _reference(x, conv_weight, conv_bias):
    """Pure-JAX reference of the PyTorch forward (for correctness checks)."""
    B, C, H, W = x.shape
    E = conv_weight.shape[0]
    P = PATCH_SIZE
    Hn, Wn = H // P, W // P
    patches = x.reshape(B, C, Hn, P, Wn, P).transpose(0, 2, 4, 1, 3, 5)
    patches = patches.reshape(B, Hn * Wn, C * P * P)
    return jnp.einsum("bnk,ek->bne", patches, conv_weight.reshape(E, -1)) + conv_bias


if __name__ == "__main__":
    key = jax.random.PRNGKey(0)
    k_x, k_w, k_b, k_x2 = jax.random.split(key, 4)

    # Deterministic synthetic Conv2d params: weight (E, C, P, P), bias (E,)
    fan_in = NUM_CHANNELS * PATCH_SIZE * PATCH_SIZE
    conv_weight = jax.random.normal(
        k_w, (EMBED_DIM, NUM_CHANNELS, PATCH_SIZE, PATCH_SIZE), dtype=jnp.float32
    ) * (1.0 / fan_in**0.5)
    conv_bias = jax.random.normal(k_b, (EMBED_DIM,), dtype=jnp.float32) * 0.01

    # --- check 1: small image, auto tile (single-step grid), f32 ---
    B, H, W = 2, 32, 32
    x = jax.random.normal(k_x, (B, NUM_CHANNELS, H, W), dtype=jnp.float32)
    out = jax.block_until_ready(patch_embedding(x, conv_weight, conv_bias))
    ref = _reference(x, conv_weight, conv_bias)
    assert out.shape == (B, (H // PATCH_SIZE) * (W // PATCH_SIZE), EMBED_DIM)
    assert jnp.allclose(out, ref, atol=1e-4, rtol=1e-4)

    # --- check 2: multi-step grid with a ragged last tile (M=32, tm=24 -> grid=2,
    #     exercises the no-pad / masked-tail path) ---
    B2, H2, W2 = 2, 64, 64
    x2 = jax.random.normal(k_x2, (B2, NUM_CHANNELS, H2, W2), dtype=jnp.float32)
    out2 = jax.block_until_ready(patch_embedding(x2, conv_weight, conv_bias, tm=24))
    ref2 = _reference(x2, conv_weight, conv_bias)
    assert out2.shape == (B2, (H2 // PATCH_SIZE) * (W2 // PATCH_SIZE), EMBED_DIM)
    assert jnp.allclose(out2, ref2, atol=1e-4, rtol=1e-4)

    # --- check 3: bf16 compute + bf16 output (f32 MXU accumulation) ---
    out3 = jax.block_until_ready(
        patch_embedding(x2, conv_weight, conv_bias, tm=16,
                        compute_dtype=jnp.bfloat16, out_dtype=jnp.bfloat16)
    )
    assert out3.dtype == jnp.bfloat16
    assert jnp.allclose(out3.astype(jnp.float32), ref2, atol=5e-2, rtol=5e-2)

    print("KERNEL_OK")
</pallas_src>

<mosaic_0001>
module attributes {stable_mosaic.version = 11 : i64} {
  func.func @_patch_embed_kernel(%arg0: i32, %arg1: memref<8x256xf32, #tpu.memory_space<vmem>>, %arg2: memref<256x768xf32, #tpu.memory_space<vmem>>, %arg3: memref<1x768xf32, #tpu.memory_space<vmem>>, %arg4: memref<8x768xf32, #tpu.memory_space<vmem>>) attributes {dimension_semantics = [#tpu.dimension_semantics<parallel>], iteration_bounds = array<i64: 1>, scalar_prefetch = 0 : i64, scratch_operands = 0 : i64, tpu.core_type = #tpu.core_type<tc>, window_params = [{transform_indices = @transform_0, window_bounds = array<i64: 8, 256>}, {pipeline_mode = #tpu.pipeline_mode<synchronous>, transform_indices = @transform_1, window_bounds = array<i64: 256, 768>}, {pipeline_mode = #tpu.pipeline_mode<synchronous>, transform_indices = @transform_2, window_bounds = array<i64: 1, 768>}, {transform_indices = @transform_3, window_bounds = array<i64: 8, 768>}]} {
    %c0 = arith.constant 0 : index
    %c0_0 = arith.constant 0 : index
    %0 = vector.load %arg1[%c0, %c0_0] : memref<8x256xf32, #tpu.memory_space<vmem>>, vector<8x256xf32>
    %c0_1 = arith.constant 0 : index
    %c0_2 = arith.constant 0 : index
    %1 = vector.load %arg2[%c0_1, %c0_2] : memref<256x768xf32, #tpu.memory_space<vmem>>, vector<256x768xf32>
    %cst = arith.constant dense<0.000000e+00> : vector<8x768xf32>
    %2 = tpu.matmul %0, %1, %cst {dimension_numbers = #tpu.dot_dimension_numbers<[1], [0], [0], [1], [0, 0, 1, 1], [], []>} : vector<8x256xf32>, vector<256x768xf32>, vector<8x768xf32> -> vector<8x768xf32>
    %c0_3 = arith.constant 0 : index
    %c0_4 = arith.constant 0 : index
    %3 = vector.load %arg3[%c0_3, %c0_4] : memref<1x768xf32, #tpu.memory_space<vmem>>, vector<1x768xf32>
    %4 = vector.broadcast %3 : vector<1x768xf32> to vector<8x768xf32>
    %5 = arith.addf %2, %4 : vector<8x768xf32>
    %c0_5 = arith.constant 0 : index
    %c0_6 = arith.constant 0 : index
    %6 = vector.load %arg4[%c0_5, %c0_6] : memref<8x768xf32, #tpu.memory_space<vmem>>, vector<8x768xf32>
    tpu.vector_store %arg4[%c0_5, %c0_6], %5 {strides = array<i32>} : memref<8x768xf32, #tpu.memory_space<vmem>>, vector<8x768xf32>,
    return
  }
  func.func @transform_0(%arg0: i32) -> (i32, i32) {
    %c0_i32 = arith.constant 0 : i32
    %c0_i32_0 = arith.constant 0 : i32
    return %arg0, %c0_i32 : i32, i32
  }
  func.func @transform_1(%arg0: i32) -> (i32, i32) {
    %c0_i32 = arith.constant 0 : i32
    %c0_i32_0 = arith.constant 0 : i32
    %c0_i32_1 = arith.constant 0 : i32
    return %c0_i32, %c0_i32_0 : i32, i32
  }
  func.func @transform_2(%arg0: i32) -> (i32, i32) {
    %c0_i32 = arith.constant 0 : i32
    %c0_i32_0 = arith.constant 0 : i32
    %c0_i32_1 = arith.constant 0 : i32
    return %c0_i32, %c0_i32_0 : i32, i32
  }
  func.func @transform_3(%arg0: i32) -> (i32, i32) {
    %c0_i32 = arith.constant 0 : i32
    %c0_i32_0 = arith.constant 0 : i32
    return %arg0, %c0_i32 : i32, i32
  }
}

</mosaic_0001>

<llo_original>
// kernel: tpu_custom_call.1
$region0: #{tpu_custom_call.1}
  #allocation0 [shape = 'u32[]', space=smem, size = 0x4, offset = 0x4, fixed_abs, tag = 'smem constant byte address 0x4 - core index']
  #allocation1 [shape = 'u32[144,128]{1,0:T(1,128)}', space=vmem, size = 0x12000, scoped, tag = 'internal scratch']
  %s0 = inlined_call_operand.hbm [shape: f32[8,256], index: 0, kind: input, shape index: {}]
  %s1 = inlined_call_operand.hbm [shape: f32[256,768], index: 1, kind: input, shape index: {}]
  %s2 = inlined_call_operand.vmem [shape: f32[1,768], index: 2, kind: input, shape index: {}]
  %s3 = inlined_call_operand.hbm [shape: f32[8,768], index: 3, kind: output, shape index: {}]
  %s4 = sld [smem:[#allocation0]]
  $region30: #{tpu_custom_call.1} parent=0
    _
  %s6 = ssub.s32 1, %s4
  %s7 = scalar_select 0, %s6, %s4
  $region1: #{tpu_custom_call.1} parent=0
    #allocation2 [shape = 'u8[8192]{0}', space=vmem, size = 0x2000, scoped, tag = 'input window, operand 0, single buffered']
    #allocation3 [shape = 's32[1]{0}', space=sflag, size = 0x4, scoped, tag = 'scoped memory for tpu_custom_call.1']
    #allocation4 [shape = 's32[1]{0}', space=sflag, size = 0x4, scoped, tag = 'scoped memory for tpu_custom_call.1']
    #allocation5 [shape = 'u8[786432]{0}', space=vmem, size = 0xc0000, scoped, tag = 'input window, operand 1, single buffered']
    #allocation6 [shape = 's32[1]{0}', space=sflag, size = 0x4, scoped, tag = 'scoped memory for tpu_custom_call.1']
    #allocation7 [shape = 'u8[24576]{0}', space=vmem, size = 0x6000, scoped, tag = 'output window, operand 0, single buffered']
    %8 = vsyncpa [#allocation3], 0
    %9 = vsyncpa [#allocation6], 0
    %10 = vsyncpa [#allocation4], 0
    // Predicated region
    $region2: #{tpu_custom_call.1} parent=1 // pred_check
      _
    $region3: #{tpu_custom_call.1} parent=1 // pred_check_branch
      %12 = sbr.rel (0) target = $region5
    $region4: #{tpu_custom_call.1} parent=1 // pred_region
      %s14 = ssub.s32 256, 256
      %15 = vsyncadd [#allocation3], %s14
      %s17 = sshll.u32 [#allocation2], 4
      %s18 = int_to_ptr.vmem [resolvable:$true] %s17
      %20 = dma.hbm_to_vmem [thread:$0]  %s0, 256, %s18, [#allocation3]
    $region5: #{tpu_custom_call.1} parent=1 // pred_fallthru
      _
    // Predicated region
    $region6: #{tpu_custom_call.1} parent=1 // pred_check
      _
    $region7: #{tpu_custom_call.1} parent=1 // pred_check_branch
      %22 = sbr.rel (0) target = $region9
    $region8: #{tpu_custom_call.1} parent=1 // pred_region
      %s24 = ssub.s32 24576, 24576
      %25 = vsyncadd [#allocation6], %s24
      %s26 = sshll.u32 [#allocation5], 4
      %s27 = int_to_ptr.vmem [resolvable:$true] %s26
      %32 = dma.hbm_to_vmem [thread:$0]  %s1, 24576, %s27, [#allocation6], 768, 768, 48
    $region9: #{tpu_custom_call.1} parent=1 // pred_fallthru
      _
    // Predicated region
    $region10: #{tpu_custom_call.1} parent=1 // pred_check
      _
    $region11: #{tpu_custom_call.1} parent=1 // pred_check_branch
      %34 = sbr.rel (0) target = $region13
    $region12: #{tpu_custom_call.1} parent=1 // pred_region
      _
    $region13: #{tpu_custom_call.1} parent=1 // pred_fallthru
      _
    // Predicated region
    $region14: #{tpu_custom_call.1} parent=1 // pred_check
      _
    $region15: #{tpu_custom_call.1} parent=1 // pred_check_branch
      %36 = sbr.rel (0) target = $region17
    $region16: #{tpu_custom_call.1} parent=1 // pred_region
      %37 = dma.done [#allocation3], 256
    $region17: #{tpu_custom_call.1} parent=1 // pred_fallthru
      _
    // Predicated region
    $region18: #{tpu_custom_call.1} parent=1 // pred_check
      _
    $region19: #{tpu_custom_call.1} parent=1 // pred_check_branch
      %39 = sbr.rel (0) target = $region21
    $region20: #{tpu_custom_call.1} parent=1 // pred_region
      %40 = dma.done [#allocation6], 24576
    $region21: #{tpu_custom_call.1} parent=1 // pred_fallthru
      _
    %v41 = vld [vmem:[#allocation2] sm:$0xff]
    %v42 = vld [vmem:[#allocation2 + $0x8] sm:$0xff]
    %v43 = vld [vmem:[#allocation5] sm:$0xff]
    %v44 = vld [vmem:[#allocation5 + $0x8] sm:$0xff]
    %v45 = vld [vmem:[#allocation5 + $0x10] sm:$0xff]
    %v46 = vld [vmem:[#allocation5 + $0x18] sm:$0xff]
    %v47 = vld [vmem:[#allocation5 + $0x20] sm:$0xff]
    %v48 = vld [vmem:[#allocation5 + $0x28] sm:$0xff]
    %v49 = vld [vmem:[#allocation5 + $0x30] sm:$0xff]
    %v50 = vld [vmem:[#allocation5 + $0x38] sm:$0xff]
    %v51 = vld [vmem:[#allocation5 + $0x40] sm:$0xff]
    %v52 = vld [vmem:[#allocation5 + $0x48] sm:$0xff]
    %v53 = vld [vmem:[#allocation5 + $0x50] sm:$0xff]
    %v54 = vld [vmem:[#allocation5 + $0x58] sm:$0xff]
    %v55 = vld [vmem:[#allocation5 + $0x60] sm:$0xff]
    %v56 = vld [vmem:[#allocation5 + $0x68] sm:$0xff]
    %v57 = vld [vmem:[#allocation5 + $0x70] sm:$0xff]
    %v58 = vld [vmem:[#allocation5 + $0x78] sm:$0xff]
    %v59 = vld [vmem:[#allocation5 + $0x80] sm:$0xff]
    %v60 = vld [vmem:[#allocation5 + $0x88] sm:$0xff]
    %v61 = vld [vmem:[#allocation5 + $0x90] sm:$0xff]
    %v62 = vld [vmem:[#allocation5 + $0x98] sm:$0xff]
    %v63 = vld [vmem:[#allocation5 + $0xa0] sm:$0xff]
    %v64 = vld [vmem:[#allocation5 + $0xa8] sm:$0xff]
    %v65 = vld [vmem:[#allocation5 + $0xb0] sm:$0xff]
    %v66 = vld [vmem:[#allocation5 + $0xb8] sm:$0xff]
    %v67 = vld [vmem:[#allocation5 + $0xc0] sm:$0xff]
    %v68 = vld [vmem:[#allocation5 + $0xc8] sm:$0xff]
    %v69 = vld [vmem:[#allocation5 + $0xd0] sm:$0xff]
    %v70 = vld [vmem:[#allocation5 + $0xd8] sm:$0xff]
    %v71 = vld [vmem:[#allocation5 + $0xe0] sm:$0xff]
    %v72 = vld [vmem:[#allocation5 + $0xe8] sm:$0xff]
    %v73 = vld [vmem:[#allocation5 + $0xf0] sm:$0xff]
    %v74 = vld [vmem:[#allocation5 + $0xf8] sm:$0xff]
    %v75 = vld [vmem:[#allocation5 + $0x100] sm:$0xff]
    %v76 = vld [vmem:[#allocation5 + $0x108] sm:$0xff]
    %v77 = vld [vmem:[#allocation5 + $0x110] sm:$0xff]
    %v78 = vld [vmem:[#allocation5 + $0x118] sm:$0xff]
    %v79 = vld [vmem:[#allocation5 + $0x120] sm:$0xff]
    %v80 = vld [vmem:[#allocation5 + $0x128] sm:$0xff]
    %v81 = vld [vmem:[#allocation5 + $0x130] sm:$0xff]
    %v82 = vld [vmem:[#allocation5 + $0x138] sm:$0xff]
    %v83 = vld [vmem:[#allocation5 + $0x140] sm:$0xff]
    %v84 = vld [vmem:[#allocation5 + $0x148] sm:$0xff]
    %v85 = vld [vmem:[#allocation5 + $0x150] sm:$0xff]
    %v86 = vld [vmem:[#allocation5 + $0x158] sm:$0xff]
    %v87 = vld [vmem:[#allocation5 + $0x160] sm:$0xff]
    %v88 = vld [vmem:[#allocation5 + $0x168] sm:$0xff]
    %v89 = vld [vmem:[#allocation5 + $0x170] sm:$0xff]
    %v90 = vld [vmem:[#allocation5 + $0x178] sm:$0xff]
    %v91 = vld [vmem:[#allocation5 + $0x180] sm:$0xff]
    %v92 = vld [vmem:[#allocation5 + $0x188] sm:$0xff]
    %v93 = vld [vmem:[#allocation5 + $0x190] sm:$0xff]
    %v94 = vld [vmem:[#allocation5 + $0x198] sm:$0xff]
    %v95 = vld [vmem:[#allocation5 + $0x1a0] sm:$0xff]
    %v96 = vld [vmem:[#allocation5 + $0x1a8] sm:$0xff]
    %v97 = vld [vmem:[#allocation5 + $0x1b0] sm:$0xff]
    %v98 = vld [vmem:[#allocation5 + $0x1b8] sm:$0xff]
    %v99 = vld [vmem:[#allocation5 + $0x1c0] sm:$0xff]
    %v100 = vld [vmem:[#allocation5 + $0x1c8] sm:$0xff]
    %v101 = vld [vmem:[#allocation5 + $0x1d0] sm:$0xff]
    %v102 = vld [vmem:[#allocation5 + $0x1d8] sm:$0xff]
    %v103 = vld [vmem:[#allocation5 + $0x1e0] sm:$0xff]
    %v104 = vld [vmem:[#allocation5 + $0x1e8] sm:$0xff]
    %v105 = vld [vmem:[#allocation5 + $0x1f0] sm:$0xff]
    %v106 = vld [vmem:[#allocation5 + $0x1f8] sm:$0xff]
    %v107 = vld [vmem:[#allocation5 + $0x200] sm:$0xff]
    %v108 = vld [vmem:[#allocation5 + $0x208] sm:$0xff]
    %v109 = vld [vmem:[#allocation5 + $0x210] sm:$0xff]
    %v110 = vld [vmem:[#allocation5 + $0x218] sm:$0xff]
    %v111 = vld [vmem:[#allocation5 + $0x220] sm:$0xff]
    %v112 = vld [vmem:[#allocation5 + $0x228] sm:$0xff]
    %v113 = vld [vmem:[#allocation5 + $0x230] sm:$0xff]
    %v114 = vld [vmem:[#allocation5 + $0x238] sm:$0xff]
    %v115 = vld [vmem:[#allocation5 + $0x240] sm:$0xff]
    %v116 = vld [vmem:[#allocation5 + $0x248] sm:$0xff]
    %v117 = vld [vmem:[#allocation5 + $0x250] sm:$0xff]
    %v118 = vld [vmem:[#allocation5 + $0x258] sm:$0xff]
    %v119 = vld [vmem:[#allocation5 + $0x260] sm:$0xff]
    %v120 = vld [vmem:[#allocation5 + $0x268] sm:$0xff]
    %v121 = vld [vmem:[#allocation5 + $0x270] sm:$0xff]
    %v122 = vld [vmem:[#allocation5 + $0x278] sm:$0xff]
    %v123 = vld [vmem:[#allocation5 + $0x280] sm:$0xff]
    %v124 = vld [vmem:[#allocation5 + $0x288] sm:$0xff]
    %v125 = vld [vmem:[#allocation5 + $0x290] sm:$0xff]
    %v126 = vld [vmem:[#allocation5 + $0x298] sm:$0xff]
    %v127 = vld [vmem:[#allocation5 + $0x2a0] sm:$0xff]
    %v128 = vld [vmem:[#allocation5 + $0x2a8] sm:$0xff]
    %v129 = vld [vmem:[#allocation5 + $0x2b0] sm:$0xff]
    %v130 = vld [vmem:[#allocation5 + $0x2b8] sm:$0xff]
    %v131 = vld [vmem:[#allocation5 + $0x2c0] sm:$0xff]
    %v132 = vld [vmem:[#allocation5 + $0x2c8] sm:$0xff]
    %v133 = vld [vmem:[#allocation5 + $0x2d0] sm:$0xff]
    %v134 = vld [vmem:[#allocation5 + $0x2d8] sm:$0xff]
    %v135 = vld [vmem:[#allocation5 + $0x2e0] sm:$0xff]
    %v136 = vld [vmem:[#allocation5 + $0x2e8] sm:$0xff]
    %v137 = vld [vmem:[#allocation5 + $0x2f0] sm:$0xff]
    %v138 = vld [vmem:[#allocation5 + $0x2f8] sm:$0xff]
    %v139 = vld [vmem:[#allocation5 + $0x300] sm:$0xff]
    %v140 = vld [vmem:[#allocation5 + $0x308] sm:$0xff]
    %v141 = vld [vmem:[#allocation5 + $0x310] sm:$0xff]
    %v142 = vld [vmem:[#allocation5 + $0x318] sm:$0xff]
    %v143 = vld [vmem:[#allocation5 + $0x320] sm:$0xff]
    %v144 = vld [vmem:[#allocation5 + $0x328] sm:$0xff]
    %v145 = vld [vmem:[#allocation5 + $0x330] sm:$0xff]
    %v146 = vld [vmem:[#allocation5 + $0x338] sm:$0xff]
    %v147 = vld [vmem:[#allocation5 + $0x340] sm:$0xff]
    %v148 = vld [vmem:[#allocation5 + $0x348] sm:$0xff]
    %v149 = vld [vmem:[#allocation5 + $0x350] sm:$0xff]
    %v150 = vld [vmem:[#allocation5 + $0x358] sm:$0xff]
    %v151 = vld [vmem:[#allocation5 + $0x360] sm:$0xff]
    %v152 = vld [vmem:[#allocation5 + $0x368] sm:$0xff]
    %v153 = vld [vmem:[#allocation5 + $0x370] sm:$0xff]
    %v154 = vld [vmem:[#allocation5 + $0x378] sm:$0xff]
    %v155 = vld [vmem:[#allocation5 + $0x380] sm:$0xff]
    %v156 = vld [vmem:[#allocation5 + $0x388] sm:$0xff]
    %v157 = vld [vmem:[#allocation5 + $0x390] sm:$0xff]
    %v158 = vld [vmem:[#allocation5 + $0x398] sm:$0xff]
    %v159 = vld [vmem:[#allocation5 + $0x3a0] sm:$0xff]
    %v160 = vld [vmem:[#allocation5 + $0x3a8] sm:$0xff]
    %v161 = vld [vmem:[#allocation5 + $0x3b0] sm:$0xff]
    %v162 = vld [vmem:[#allocation5 + $0x3b8] sm:$0xff]
    %v163 = vld [vmem:[#allocation5 + $0x3c0] sm:$0xff]
    %v164 = vld [vmem:[#allocation5 + $0x3c8] sm:$0xff]
    %v165 = vld [vmem:[#allocation5 + $0x3d0] sm:$0xff]
    %v166 = vld [vmem:[#allocation5 + $0x3d8] sm:$0xff]
    %v167 = vld [vmem:[#allocation5 + $0x3e0] sm:$0xff]
    %v168 = vld [vmem:[#allocation5 + $0x3e8] sm:$0xff]
    %v169 = vld [vmem:[#allocation5 + $0x3f0] sm:$0xff]
    %v170 = vld [vmem:[#allocation5 + $0x3f8] sm:$0xff]
    %v171 = vld [vmem:[#allocation5 + $0x400] sm:$0xff]
    %v172 = vld [vmem:[#allocation5 + $0x408] sm:$0xff]
    %v173 = vld [vmem:[#allocation5 + $0x410] sm:$0xff]
    %v174 = vld [vmem:[#allocation5 + $0x418] sm:$0xff]
    %v175 = vld [vmem:[#allocation5 + $0x420] sm:$0xff]
    %v176 = vld [vmem:[#allocation5 + $0x428] sm:$0xff]
    %v177 = vld [vmem:[#allocation5 + $0x430] sm:$0xff]
    %v178 = vld [vmem:[#allocation5 + $0x438] sm:$0xff]
    %v179 = vld [vmem:[#allocation5 + $0x440] sm:$0xff]
    %v180 = vld [vmem:[#allocation5 + $0x448] sm:$0xff]
    %v181 = vld [vmem:[#allocation5 + $0x450] sm:$0xff]
    %v182 = vld [vmem:[#allocation5 + $0x458] sm:$0xff]
    %v183 = vld [vmem:[#allocation5 + $0x460] sm:$0xff]
    %v184 = vld [vmem:[#allocation5 + $0x468] sm:$0xff]
    %v185 = vld [vmem:[#allocation5 + $0x470] sm:$0xff]
    %v186 = vld [vmem:[#allocation5 + $0x478] sm:$0xff]
    %v187 = vld [vmem:[#allocation5 + $0x480] sm:$0xff]
    %v188 = vld [vmem:[#allocation5 + $0x488] sm:$0xff]
    %v189 = vld [vmem:[#allocation5 + $0x490] sm:$0xff]
    %v190 = vld [vmem:[#allocation5 + $0x498] sm:$0xff]
    %v191 = vld [vmem:[#allocation5 + $0x4a0] sm:$0xff]
    %v192 = vld [vmem:[#allocation5 + $0x4a8] sm:$0xff]
    %v193 = vld [vmem:[#allocation5 + $0x4b0] sm:$0xff]
    %v194 = vld [vmem:[#allocation5 + $0x4b8] sm:$0xff]
    %v195 = vld [vmem:[#allocation5 + $0x4c0] sm:$0xff]
    %v196 = vld [vmem:[#allocation5 + $0x4c8] sm:$0xff]
    %v197 = vld [vmem:[#allocation5 + $0x4d0] sm:$0xff]
    %v198 = vld [vmem:[#allocation5 + $0x4d8] sm:$0xff]
    %v199 = vld [vmem:[#allocation5 + $0x4e0] sm:$0xff]
    %v200 = vld [vmem:[#allocation5 + $0x4e8] sm:$0xff]
    %v201 = vld [vmem:[#allocation5 + $0x4f0] sm:$0xff]
    %v202 = vld [vmem:[#allocation5 + $0x4f8] sm:$0xff]
    %v203 = vld [vmem:[#allocation5 + $0x500] sm:$0xff]
    %v204 = vld [vmem:[#allocation5 + $0x508] sm:$0xff]
    %v205 = vld [vmem:[#allocation5 + $0x510] sm:$0xff]
    %v206 = vld [vmem:[#allocation5 + $0x518] sm:$0xff]
    %v207 = vld [vmem:[#allocation5 + $0x520] sm:$0xff]
    %v208 = vld [vmem:[#allocation5 + $0x528] sm:$0xff]
    %v209 = vld [vmem:[#allocation5 + $0x530] sm:$0xff]
    %v210 = vld [vmem:[#allocation5 + $0x538] sm:$0xff]
    %v211 = vld [vmem:[#allocation5 + $0x540] sm:$0xff]
    %v212 = vld [vmem:[#allocation5 + $0x548] sm:$0xff]
    %v213 = vld [vmem:[#allocation5 + $0x550] sm:$0xff]
    %v214 = vld [vmem:[#allocation5 + $0x558] sm:$0xff]
    %v215 = vld [vmem:[#allocation5 + $0x560] sm:$0xff]
    %v216 = vld [vmem:[#allocation5 + $0x568] sm:$0xff]
    %v217 = vld [vmem:[#allocation5 + $0x570] sm:$0xff]
    %v218 = vld [vmem:[#allocation5 + $0x578] sm:$0xff]
    %v219 = vld [vmem:[#allocation5 + $0x580] sm:$0xff]
    %v220 = vld [vmem:[#allocation5 + $0x588] sm:$0xff]
    %v221 = vld [vmem:[#allocation5 + $0x590] sm:$0xff]
    %v222 = vld [vmem:[#allocation5 + $0x598] sm:$0xff]
    %v223 = vld [vmem:[#allocation5 + $0x5a0] sm:$0xff]
    %v224 = vld [vmem:[#allocation5 + $0x5a8] sm:$0xff]
    %v225 = vld [vmem:[#allocation5 + $0x5b0] sm:$0xff]
    %v226 = vld [vmem:[#allocation5 + $0x5b8] sm:$0xff]
    %v227 = vld [vmem:[#allocation5 + $0x5c0] sm:$0xff]
    %v228 = vld [vmem:[#allocation5 + $0x5c8] sm:$0xff]
    %v229 = vld [vmem:[#allocation5 + $0x5d0] sm:$0xff]
    %v230 = vld [vmem:[#allocation5 + $0x5d8] sm:$0xff]
    %v231 = vld [vmem:[#allocation5 + $0x5e0] sm:$0xff]
    %v232 = vld [vmem:[#allocation5 + $0x5e8] sm:$0xff]
    %v233 = vld [vmem:[#allocation5 + $0x5f0] sm:$0xff]
    %v234 = vld [vmem:[#allocation5 + $0x5f8] sm:$0xff]
    %v235 = vld [vmem:[%s2] sm:$0x3f]
    %v237 = vlaneseq
    %v238 = vshrl.u32 %v237, 7
    %v239 = vsub.s32 0, %v238
    %v240 = vrot.slane %v235, %v239
    %v241 = vlaneseq
    %v242 = vshrl.u32 %v241, 7
    %v243 = vsub.s32 1, %v242
    %v244 = vrot.slane %v235, %v243
    %v245 = vlaneseq
    %v246 = vshrl.u32 %v245, 7
    %v247 = vsub.s32 2, %v246
    %v248 = vrot.slane %v235, %v247
    %v249 = vlaneseq
    %v250 = vshrl.u32 %v249, 7
    %v251 = vsub.s32 3, %v250
    %v252 = vrot.slane %v235, %v251
    %v253 = vlaneseq
    %v254 = vshrl.u32 %v253, 7
    %v255 = vsub.s32 4, %v254
    %v256 = vrot.slane %v235, %v255
    %v257 = vlaneseq
    %v258 = vshrl.u32 %v257, 7
    %v259 = vsub.s32 5, %v258
    %v260 = vrot.slane %v235, %v259
    %267 = vmatprep.subr.mxu0 %v44
    %268 = vmatpush1.msra.mxu0 %v43
    %269 = vmatprep.subr.mxu0 %v50
    %270 = vmatpush1.msra.mxu0 %v49
    %271 = vmatprep.subr.mxu0 %v56
    %272 = vmatpush1.msra.mxu0 %v55
    %273 = vmatprep.subr.mxu0 %v62
    %274 = vmatpush1.msra.mxu0 %v61
    %275 = vmatprep.subr.mxu0 %v68
    %276 = vmatpush1.msra.mxu0 %v67
    %277 = vmatprep.subr.mxu0 %v74
    %278 = vmatpush1.msra.mxu0 %v73
    %279 = vmatprep.subr.mxu0 %v80
    %280 = vmatpush1.msra.mxu0 %v79
    %281 = vmatprep.subr.mxu0 %v86
    %282 = vmatpush1.msra.mxu0 %v85
    %283 = vmatprep.subr.mxu0 %v92
    %284 = vmatpush1.msra.mxu0 %v91
    %285 = vmatprep.subr.mxu0 %v98
    %286 = vmatpush1.msra.mxu0 %v97
    %287 = vmatprep.subr.mxu0 %v104
    %288 = vmatpush1.msra.mxu0 %v103
    %289 = vmatprep.subr.mxu0 %v110
    %290 = vmatpush1.msra.mxu0 %v109
    %291 = vmatprep.subr.mxu0 %v116
    %292 = vmatpush1.msra.mxu0 %v115
    %293 = vmatprep.subr.mxu0 %v122
    %294 = vmatpush1.msra.mxu0 %v121
    %295 = vmatprep.subr.mxu0 %v128
    %296 = vmatpush1.msra.mxu0 %v127
    %297 = vmatprep.subr.mxu0 %v134
    %298 = vmatpush1.msra.mxu0 %v133
    %299 = vmatprep.subr.mxu0 %v140
    %300 = vmatpush1.msra.mxu0 %v139
    %301 = vmatprep.subr.mxu0 %v146
    %302 = vmatpush1.msra.mxu0 %v145
    %303 = vmatprep.subr.mxu0 %v152
    %304 = vmatpush1.msra.mxu0 %v151
    %305 = vmatprep.subr.mxu0 %v158
    %306 = vmatpush1.msra.mxu0 %v157
    %307 = vmatprep.subr.mxu0 %v164
    %308 = vmatpush1.msra.mxu0 %v163
    %309 = vmatprep.subr.mxu0 %v170
    %310 = vmatpush1.msra.mxu0 %v169
    %311 = vmatprep.subr.mxu0 %v176
    %312 = vmatpush1.msra.mxu0 %v175
    %313 = vmatprep.subr.mxu0 %v182
    %314 = vmatpush1.msra.mxu0 %v181
    %315 = vmatprep.subr.mxu0 %v188
    %316 = vmatpush1.msra.mxu0 %v187
    %317 = vmatprep.subr.mxu0 %v194
    %318 = vmatpush1.msra.mxu0 %v193
    %319 = vmatprep.subr.mxu0 %v200
    %320 = vmatpush1.msra.mxu0 %v199
    %321 = vmatprep.subr.mxu0 %v206
    %322 = vmatpush1.msra.mxu0 %v205
    %323 = vmatprep.subr.mxu0 %v212
    %324 = vmatpush1.msra.mxu0 %v211
    %325 = vmatprep.subr.mxu0 %v218
    %326 = vmatpush1.msra.mxu0 %v217
    %327 = vmatprep.subr.mxu0 %v224
    %328 = vmatpush1.msra.mxu0 %v223
    %329 = vmatprep.subr.mxu0 %v230
    %330 = vmatpush1.msra.mxu0 %v229
    %331 = vmatprep.mubr.f32.mxu0 %v42
    %332 = vmatmul.mubr.f32.gmra.mrb[0].mxu0 %v41
    %v333 = vpop.f32.mrb[0].mxu0
    %v334 = vadd.f32 %v240, %v333
    %v335 = vpop.f32.mrb[0].mxu0
    %v336 = vadd.f32 %v244, %v335
    %337 = vdwg.mxu0
    %338 = vmatprep.subr.mxu0 %v46
    %339 = vmatpush1.msra.mxu0 %v45
    %340 = vmatprep.subr.mxu0 %v52
    %341 = vmatpush1.msra.mxu0 %v51
    %342 = vmatprep.subr.mxu0 %v58
    %343 = vmatpush1.msra.mxu0 %v57
    %344 = vmatprep.subr.mxu0 %v64
    %345 = vmatpush1.msra.mxu0 %v63
    %346 = vmatprep.subr.mxu0 %v70
    %347 = vmatpush1.msra.mxu0 %v69
    %348 = vmatprep.subr.mxu0 %v76
    %349 = vmatpush1.msra.mxu0 %v75
    %350 = vmatprep.subr.mxu0 %v82
    %351 = vmatpush1.msra.mxu0 %v81
    %352 = vmatprep.subr.mxu0 %v88
    %353 = vmatpush1.msra.mxu0 %v87
    %354 = vmatprep.subr.mxu0 %v94
    %355 = vmatpush1.msra.mxu0 %v93
    %356 = vmatprep.subr.mxu0 %v100
    %357 = vmatpush1.msra.mxu0 %v99
    %358 = vmatprep.subr.mxu0 %v106
    %359 = vmatpush1.msra.mxu0 %v105
    %360 = vmatprep.subr.mxu0 %v112
    %361 = vmatpush1.msra.mxu0 %v111
    %362 = vmatprep.subr.mxu0 %v118
    %363 = vmatpush1.msra.mxu0 %v117
    %364 = vmatprep.subr.mxu0 %v124
    %365 = vmatpush1.msra.mxu0 %v123
    %366 = vmatprep.subr.mxu0 %v130
    %367 = vmatpush1.msra.mxu0 %v129
    %368 = vmatprep.subr.mxu0 %v136
    %369 = vmatpush1.msra.mxu0 %v135
    %370 = vmatprep.subr.mxu0 %v142
    %371 = vmatpush1.msra.mxu0 %v141
    %372 = vmatprep.subr.mxu0 %v148
    %373 = vmatpush1.msra.mxu0 %v147
    %374 = vmatprep.subr.mxu0 %v154
    %375 = vmatpush1.msra.mxu0 %v153
    %376 = vmatprep.subr.mxu0 %v160
    %377 = vmatpush1.msra.mxu0 %v159
    %378 = vmatprep.subr.mxu0 %v166
    %379 = vmatpush1.msra.mxu0 %v165
    %380 = vmatprep.subr.mxu0 %v172
    %381 = vmatpush1.msra.mxu0 %v171
    %382 = vmatprep.subr.mxu0 %v178
    %383 = vmatpush1.msra.mxu0 %v177
    %384 = vmatprep.subr.mxu0 %v184
    %385 = vmatpush1.msra.mxu0 %v183
    %386 = vmatprep.subr.mxu0 %v190
    %387 = vmatpush1.msra.mxu0 %v189
    %388 = vmatprep.subr.mxu0 %v196
    %389 = vmatpush1.msra.mxu0 %v195
    %390 = vmatprep.subr.mxu0 %v202
    %391 = vmatpush1.msra.mxu0 %v201
    %392 = vmatprep.subr.mxu0 %v208
    %393 = vmatpush1.msra.mxu0 %v207
    %394 = vmatprep.subr.mxu0 %v214
    %395 = vmatpush1.msra.mxu0 %v213
    %396 = vmatprep.subr.mxu0 %v220
    %397 = vmatpush1.msra.mxu0 %v219
    %398 = vmatprep.subr.mxu0 %v226
    %399 = vmatpush1.msra.mxu0 %v225
    %400 = vmatprep.subr.mxu0 %v232
    %401 = vmatpush1.msra.mxu0 %v231
    %402 = vmatprep.mubr.f32.mxu0 %v42
    %403 = vmatmul.mubr.f32.gmra.mrb[0].mxu0 %v41
    %v404 = vpop.f32.mrb[0].mxu0
    %v405 = vadd.f32 %v248, %v404
    %v406 = vpop.f32.mrb[0].mxu0
    %v407 = vadd.f32 %v252, %v406
    %408 = vdwg.mxu0
    %409 = vmatprep.subr.mxu0 %v48
    %410 = vmatpush1.msra.mxu0 %v47
    %411 = vmatprep.subr.mxu0 %v54
    %412 = vmatpush1.msra.mxu0 %v53
    %413 = vmatprep.subr.mxu0 %v60
    %414 = vmatpush1.msra.mxu0 %v59
    %415 = vmatprep.subr.mxu0 %v66
    %416 = vmatpush1.msra.mxu0 %v65
    %417 = vmatprep.subr.mxu0 %v72
    %418 = vmatpush1.msra.mxu0 %v71
    %419 = vmatprep.subr.mxu0 %v78
    %420 = vmatpush1.msra.mxu0 %v77
    %421 = vmatprep.subr.mxu0 %v84
    %422 = vmatpush1.msra.mxu0 %v83
    %423 = vmatprep.subr.mxu0 %v90
    %424 = vmatpush1.msra.mxu0 %v89
    %425 = vmatprep.subr.mxu0 %v96
    %426 = vmatpush1.msra.mxu0 %v95
    %427 = vmatprep.subr.mxu0 %v102
    %428 = vmatpush1.msra.mxu0 %v101
    %429 = vmatprep.subr.mxu0 %v108
    %430 = vmatpush1.msra.mxu0 %v107
    %431 = vmatprep.subr.mxu0 %v114
    %432 = vmatpush1.msra.mxu0 %v113
    %433 = vmatprep.subr.mxu0 %v120
    %434 = vmatpush1.msra.mxu0 %v119
    %435 = vmatprep.subr.mxu0 %v126
    %436 = vmatpush1.msra.mxu0 %v125
    %437 = vmatprep.subr.mxu0 %v132
    %438 = vmatpush1.msra.mxu0 %v131
    %439 = vmatprep.subr.mxu0 %v138
    %440 = vmatpush1.msra.mxu0 %v137
    %441 = vmatprep.subr.mxu0 %v144
    %442 = vmatpush1.msra.mxu0 %v143
    %443 = vmatprep.subr.mxu0 %v150
    %444 = vmatpush1.msra.mxu0 %v149
    %445 = vmatprep.subr.mxu0 %v156
    %446 = vmatpush1.msra.mxu0 %v155
    %447 = vmatprep.subr.mxu0 %v162
    %448 = vmatpush1.msra.mxu0 %v161
    %449 = vmatprep.subr.mxu0 %v168
    %450 = vmatpush1.msra.mxu0 %v167
    %451 = vmatprep.subr.mxu0 %v174
    %452 = vmatpush1.msra.mxu0 %v173
    %453 = vmatprep.subr.mxu0 %v180
    %454 = vmatpush1.msra.mxu0 %v179
    %455 = vmatprep.subr.mxu0 %v186
    %456 = vmatpush1.msra.mxu0 %v185
    %457 = vmatprep.subr.mxu0 %v192
    %458 = vmatpush1.msra.mxu0 %v191
    %459 = vmatprep.subr.mxu0 %v198
    %460 = vmatpush1.msra.mxu0 %v197
    %461 = vmatprep.subr.mxu0 %v204
    %462 = vmatpush1.msra.mxu0 %v203
    %463 = vmatprep.subr.mxu0 %v210
    %464 = vmatpush1.msra.mxu0 %v209
    %465 = vmatprep.subr.mxu0 %v216
    %466 = vmatpush1.msra.mxu0 %v215
    %467 = vmatprep.subr.mxu0 %v222
    %468 = vmatpush1.msra.mxu0 %v221
    %469 = vmatprep.subr.mxu0 %v228
    %470 = vmatpush1.msra.mxu0 %v227
    %471 = vmatprep.subr.mxu0 %v234
    %472 = vmatpush1.msra.mxu0 %v233
    %473 = vmatprep.mubr.f32.mxu0 %v42
    %474 = vmatmul.mubr.f32.gmra.mrb[0].mxu0 %v41
    %v475 = vpop.f32.mrb[0].mxu0
    %v476 = vadd.f32 %v256, %v475
    %v477 = vpop.f32.mrb[0].mxu0
    %v478 = vadd.f32 %v260, %v477
    %479 = vdwg.mxu0
    %480 = vst [vmem:[#allocation7] sm:$0xff] %v334
    %481 = vst [vmem:[#allocation7 + $0x8] sm:$0xff] %v336
    %482 = vst [vmem:[#allocation7 + $0x10] sm:$0xff] %v405
    %483 = vst [vmem:[#allocation7 + $0x18] sm:$0xff] %v407
    %484 = vst [vmem:[#allocation7 + $0x20] sm:$0xff] %v476
    %485 = vst [vmem:[#allocation7 + $0x28] sm:$0xff] %v478
    // Predicated region
    $region22: #{tpu_custom_call.1} parent=1 // pred_check
      _
    $region23: #{tpu_custom_call.1} parent=1 // pred_check_branch
      %487 = sbr.rel (0) target = $region25
    $region24: #{tpu_custom_call.1} parent=1 // pred_region
      %s489 = ssub.s32 768, 768
      %490 = vsyncadd [#allocation4], %s489
      %s492 = sshll.u32 [#allocation7], 4
      %s493 = int_to_ptr.vmem [resolvable:$true] %s492
      %495 = dma.vmem_to_hbm [thread:$0]  %s493, 768, %s3, [#allocation4]
    $region25: #{tpu_custom_call.1} parent=1 // pred_fallthru
      _
    // Predicated region
    $region26: #{tpu_custom_call.1} parent=1 // pred_check
      _
    $region27: #{tpu_custom_call.1} parent=1 // pred_check_branch
      %497 = sbr.rel (0) target = $region29
    $region28: #{tpu_custom_call.1} parent=1 // pred_region
      %498 = dma.done [#allocation4], 768
    $region29: #{tpu_custom_call.1} parent=1 // pred_fallthru
      _
    %499 = vsyncpa [#allocation3], 1
    %500 = vsyncpa [#allocation6], 1
    %501 = vsyncpa [#allocation4], 1

</llo_original>
